<compile_context>
chip_gen: v7x
topology: tpu7x:2x2x1
jax: 0.10.0
libtpu: 0.0.40
codegen_flags: <defaults>
</compile_context>

<pallas_src>
import jax
import jax.numpy as jnp
from jax.experimental import pallas as pl
from jax.experimental.pallas import tpu as pltpu


def _round_up(x: int, m: int) -> int:
    return (x + m - 1) // m * m


def _cdiv(a: int, b: int) -> int:
    return (a + b - 1) // b


# --------------------------------------------------------------------------- #
# Kernel
# --------------------------------------------------------------------------- #
def mlp_kernel(x_ref, w1_ref, b1_ref, w2_ref, b2_ref, out_ref, acc_ref):
    """One (batch_tile, k_tile) grid step of fc1 -> ReLU -> fc2.

    Grid: (batch tile ["parallel"], fc1 reduction tile ["arbitrary", last]).
    acc_ref: f32 VMEM scratch holding the partial fc1 output for this batch tile.
    """
    k = pl.program_id(1)

    @pl.when(k == 0)
    def _():
        acc_ref[...] = jnp.zeros_like(acc_ref)

    # fc1 partial product: (Bt, Kt) @ (Kt, Hp) -> f32 accumulator.
    # x is streamed f32 and cast to bf16 per tile; weights are pre-cast bf16.
    acc_ref[...] += jnp.dot(
        x_ref[...].astype(w1_ref.dtype), w1_ref[...],
        preferred_element_type=jnp.float32,
    )

    # Epilogue only on the last reduction step: bias + ReLU + fc2 + bias.
    @pl.when(k == pl.num_programs(1) - 1)
    def _():
        h = jnp.maximum(acc_ref[...] + b1_ref[...], 0.0)
        o = jnp.dot(
            h.astype(w2_ref.dtype), w2_ref[...],
            preferred_element_type=jnp.float32,
        )
        out_ref[...] = (o + b2_ref[...]).astype(out_ref.dtype)


# --------------------------------------------------------------------------- #
# One-time parameter preparation (hoisted out of the per-call path)
# --------------------------------------------------------------------------- #
def prepare_text_classifier_params(w1, b1, w2, b2, *, k_tile_max=2048):
    """w1: (H, In); b1: (H,); w2: (C, H); b2: (C,).

    Returns a dict with pre-transposed / zero-padded / bf16-cast operands and
    the K-tiling plan.  Call once at model init, reuse on every forward.
    """
    H, In = w1.shape
    C, H_w = w2.shape
    assert H_w == H

    Hp = _round_up(H, 128)
    Cp = _round_up(C, 128)

    # K plan: k_tile is a multiple of 128 that tiles In_p exactly.
    In_128 = _round_up(In, 128)
    nk = _cdiv(In_128, k_tile_max)
    k_tile = _cdiv(In_128 // 128, nk) * 128
    In_p = nk * k_tile

    bf16 = jnp.bfloat16
    # Zero padding => padded inputs / hidden units / classes contribute
    # exactly 0 through the matmuls, bias-add and ReLU.
    w1t = jnp.zeros((In_p, Hp), bf16).at[:In, :H].set(w1.T.astype(bf16))
    b1p = jnp.zeros((1, Hp), jnp.float32).at[0, :H].set(b1.astype(jnp.float32))
    w2t = jnp.zeros((Hp, Cp), bf16).at[:H, :C].set(w2.T.astype(bf16))
    b2p = jnp.zeros((1, Cp), jnp.float32).at[0, :C].set(b2.astype(jnp.float32))

    return dict(w1t=w1t, b1p=b1p, w2t=w2t, b2p=b2p,
                In=In, H=H, C=C, In_p=In_p, Hp=Hp, Cp=Cp,
                k_tile=k_tile, nk=nk)


# --------------------------------------------------------------------------- #
# Forward with prepared params
# --------------------------------------------------------------------------- #
def text_classifier_forward_prepared(x, params, *, b_tile_max=512,
                                     min_batch_tiles=2):
    """x: (B, In) f32.  Returns (B, C) f32 logits = fc2(relu(fc1(x)))."""
    B, In = x.shape
    assert In == params["In"], (In, params["In"])
    In_p, Hp, Cp = params["In_p"], params["Hp"], params["Cp"]
    C = params["C"]
    k_tile, nk = params["k_tile"], params["nk"]
    w1t, b1p, w2t, b2p = (params["w1t"], params["b1p"],
                          params["w2t"], params["b2p"])

    # Balanced batch tiling: minimal padding, and >= min_batch_tiles tiles
    # (so v7x's 2 TensorCores both get work) whenever B allows.
    # b_tile_max must be a multiple of 16.
    nb_min = min_batch_tiles if B >= 16 * min_batch_tiles else 1
    nb = max(_cdiv(B, b_tile_max), nb_min)
    b_tile = _round_up(_cdiv(B, nb), 16)
    nb = _cdiv(B, b_tile)
    Bp = nb * b_tile

    # Only pad the ragged B/K tail; no dtype-cast copy of x.
    x = x.astype(jnp.float32)
    if (Bp, In_p) != (B, In):
        x = jnp.pad(x, ((0, Bp - B), (0, In_p - In)))

    grid = (nb, nk)

    # Advisory cost estimate; w1 is re-streamed once per batch tile.
    cost = pl.CostEstimate(
        flops=2 * Bp * (In_p * Hp + Hp * Cp),
        transcendentals=0,
        bytes_accessed=(Bp * In_p * 4            # x (f32 in)
                        + nb * w1t.size * 2      # w1 per batch tile
                        + w2t.size * 2 + b1p.size * 4 + b2p.size * 4
                        + Bp * Cp * 4),          # logits out
    )

    # Explicit scoped-VMEM budget from the actual working set
    # (double-buffered streaming inputs + accumulator + output + invariants),
    # clamped to a range valid on v5e/v6e/v7x.
    vmem_needed = (2 * (b_tile * k_tile * 4 + k_tile * Hp * 2)
                   + b_tile * Hp * 4
                   + 2 * b_tile * Cp * 4
                   + 2 * (Hp * Cp * 2 + Hp * 4 + Cp * 4))
    vmem_limit = min(max(int(vmem_needed * 1.5) + (2 << 20), 32 << 20), 56 << 20)

    out_p = pl.pallas_call(
        mlp_kernel,
        out_shape=jax.ShapeDtypeStruct((Bp, Cp), jnp.float32),
        grid_spec=pltpu.PrefetchScalarGridSpec(
            num_scalar_prefetch=0,
            grid=grid,
            in_specs=[
                pl.BlockSpec((b_tile, k_tile), lambda i, k: (i, k)),  # x (f32)
                pl.BlockSpec((k_tile, Hp), lambda i, k: (k, 0)),      # w1^T
                pl.BlockSpec((1, Hp), lambda i, k: (0, 0)),           # b1
                pl.BlockSpec((Hp, Cp), lambda i, k: (0, 0)),          # w2^T
                pl.BlockSpec((1, Cp), lambda i, k: (0, 0)),           # b2
            ],
            out_specs=pl.BlockSpec((b_tile, Cp), lambda i, k: (i, 0)),
            scratch_shapes=[pltpu.VMEM((b_tile, Hp), jnp.float32)],
        ),
        compiler_params=pltpu.CompilerParams(
            dimension_semantics=("parallel", "arbitrary"),
            vmem_limit_bytes=vmem_limit,
        ),
        cost_estimate=cost,
    )(x, w1t, b1p, w2t, b2p)

    # Slice padded logits back to the real (B, C).
    return out_p[:B, :C]


def text_classifier_forward(x, w1, b1, w2, b2, *, k_tile_max=2048,
                            b_tile_max=512, min_batch_tiles=2):
    """Convenience wrapper (prep + forward).  In real use, hoist
    prepare_text_classifier_params out and call *_prepared per step."""
    params = prepare_text_classifier_params(w1, b1, w2, b2,
                                            k_tile_max=k_tile_max)
    return text_classifier_forward_prepared(x, params, b_tile_max=b_tile_max,
                                            min_batch_tiles=min_batch_tiles)


# --------------------------------------------------------------------------- #
# References
# --------------------------------------------------------------------------- #
def reference_forward_bf16(x, w1, b1, w2, b2):
    """Same numerics as the kernel: bf16 matmul inputs, f32 accumulation."""
    h = jnp.dot(x.astype(jnp.bfloat16), w1.T.astype(jnp.bfloat16),
                preferred_element_type=jnp.float32) + b1
    h = jnp.maximum(h, 0.0)
    return jnp.dot(h.astype(jnp.bfloat16), w2.T.astype(jnp.bfloat16),
                   preferred_element_type=jnp.float32) + b2


def reference_forward_f32(x, w1, b1, w2, b2):
    h = jnp.maximum(x @ w1.T + b1, 0.0)
    return h @ w2.T + b2


if __name__ == "__main__":
    # Small, deterministic synthetic config (mirrors nn.Linear shapes).
    batch = 32          # enough rows to get 2 batch tiles (megacore path)
    input_size = 256    # stand-in for CountVectorizer vocab size
    hidden_size = 100
    num_classes = 10    # stand-in for number of unique IPC sections

    key = jax.random.PRNGKey(0)
    kx, kw1, kb1, kw2, kb2 = jax.random.split(key, 5)

    x = jax.random.normal(kx, (batch, input_size), dtype=jnp.float32)
    lim1 = 1.0 / (input_size ** 0.5)
    w1 = jax.random.uniform(kw1, (hidden_size, input_size), jnp.float32, -lim1, lim1)
    b1 = jax.random.uniform(kb1, (hidden_size,), jnp.float32, -lim1, lim1)
    lim2 = 1.0 / (hidden_size ** 0.5)
    w2 = jax.random.uniform(kw2, (num_classes, hidden_size), jnp.float32, -lim2, lim2)
    b2 = jax.random.uniform(kb2, (num_classes,), jnp.float32, -lim2, lim2)

    ref_bf16 = reference_forward_bf16(x, w1, b1, w2, b2)
    ref_f32 = reference_forward_f32(x, w1, b1, w2, b2)

    # Run 1: default (large-tile) configuration; K fits in one reduction step.
    params = prepare_text_classifier_params(w1, b1, w2, b2)   # one-time prep
    out = text_classifier_forward_prepared(x, params)
    out = jax.block_until_ready(out)
    assert out.shape == (batch, num_classes)
    assert jnp.allclose(out, ref_bf16, atol=2e-3, rtol=2e-3), \
        float(jnp.max(jnp.abs(out - ref_bf16)))
    assert jnp.allclose(out, ref_f32, atol=1e-1, rtol=1e-1), \
        float(jnp.max(jnp.abs(out - ref_f32)))

    # Run 2: small tiles to exercise the multi-step K reduction and multiple
    # batch tiles on the same data.
    out2 = text_classifier_forward(x, w1, b1, w2, b2,
                                   k_tile_max=128, b_tile_max=16)
    out2 = jax.block_until_ready(out2)
    assert out2.shape == (batch, num_classes)
    assert jnp.allclose(out2, ref_bf16, atol=2e-3, rtol=2e-3), \
        float(jnp.max(jnp.abs(out2 - ref_bf16)))

    print("KERNEL_OK")
</pallas_src>

<mosaic_0001>
module attributes {stable_mosaic.version = 11 : i64} {
  func.func @mlp_kernel(%arg0: i32, %arg1: i32, %arg2: memref<16x256xf32, #tpu.memory_space<vmem>>, %arg3: memref<256x128xbf16, #tpu.memory_space<vmem>>, %arg4: memref<1x128xf32, #tpu.memory_space<vmem>>, %arg5: memref<128x128xbf16, #tpu.memory_space<vmem>>, %arg6: memref<1x128xf32, #tpu.memory_space<vmem>>, %arg7: memref<16x128xf32, #tpu.memory_space<vmem>>, %arg8: memref<16x128xf32, #tpu.memory_space<vmem>>) attributes {dimension_semantics = [#tpu.dimension_semantics<parallel>, #tpu.dimension_semantics<arbitrary>], iteration_bounds = array<i64: 2, 1>, scalar_prefetch = 0 : i64, scratch_operands = 1 : i64, tpu.core_type = #tpu.core_type<tc>, window_params = [{transform_indices = @transform_0, window_bounds = array<i64: 16, 256>}, {transform_indices = @transform_1, window_bounds = array<i64: 256, 128>}, {pipeline_mode = #tpu.pipeline_mode<synchronous>, transform_indices = @transform_2, window_bounds = array<i64: 1, 128>}, {pipeline_mode = #tpu.pipeline_mode<synchronous>, transform_indices = @transform_3, window_bounds = array<i64: 128, 128>}, {pipeline_mode = #tpu.pipeline_mode<synchronous>, transform_indices = @transform_4, window_bounds = array<i64: 1, 128>}, {transform_indices = @transform_5, window_bounds = array<i64: 16, 128>}]} {
    %c0_i32 = arith.constant 0 : i32
    %0 = arith.cmpi eq, %arg1, %c0_i32 : i32
    %1 = arith.extui %0 : i1 to i32
    %c0_i32_0 = arith.constant 0 : i32
    %2 = arith.cmpi ne, %1, %c0_i32_0 : i32
    scf.if %2 {
      %cst_10 = arith.constant 0.000000e+00 : f32
      %13 = vector.broadcast %cst_10 : f32 to vector<16x128xf32>
      %c0_11 = arith.constant 0 : index
      %c0_12 = arith.constant 0 : index
      %14 = vector.load %arg8[%c0_11, %c0_12] : memref<16x128xf32, #tpu.memory_space<vmem>>, vector<16x128xf32>
      tpu.vector_store %arg8[%c0_11, %c0_12], %13 {strides = array<i32>} : memref<16x128xf32, #tpu.memory_space<vmem>>, vector<16x128xf32>,
    } else {
    }
    %c0 = arith.constant 0 : index
    %c0_1 = arith.constant 0 : index
    %3 = vector.load %arg8[%c0, %c0_1] : memref<16x128xf32, #tpu.memory_space<vmem>>, vector<16x128xf32>
    %c0_2 = arith.constant 0 : index
    %c0_3 = arith.constant 0 : index
    %4 = vector.load %arg2[%c0_2, %c0_3] : memref<16x256xf32, #tpu.memory_space<vmem>>, vector<16x256xf32>
    %5 = arith.truncf %4 : vector<16x256xf32> to vector<16x256xbf16>
    %c0_4 = arith.constant 0 : index
    %c0_5 = arith.constant 0 : index
    %6 = vector.load %arg3[%c0_4, %c0_5] : memref<256x128xbf16, #tpu.memory_space<vmem>>, vector<256x128xbf16>
    %cst = arith.constant dense<0.000000e+00> : vector<16x128xf32>
    %7 = tpu.matmul %5, %6, %cst {dimension_numbers = #tpu.dot_dimension_numbers<[1], [0], [0], [1], [0, 0, 1, 1], [], []>} : vector<16x256xbf16>, vector<256x128xbf16>, vector<16x128xf32> -> vector<16x128xf32>
    %8 = arith.addf %3, %7 : vector<16x128xf32>
    %c0_6 = arith.constant 0 : index
    %c0_7 = arith.constant 0 : index
    %9 = vector.load %arg8[%c0_6, %c0_7] : memref<16x128xf32, #tpu.memory_space<vmem>>, vector<16x128xf32>
    tpu.vector_store %arg8[%c0_6, %c0_7], %8 {strides = array<i32>} : memref<16x128xf32, #tpu.memory_space<vmem>>, vector<16x128xf32>,
    %c0_i32_8 = arith.constant 0 : i32
    %10 = arith.cmpi eq, %arg1, %c0_i32_8 : i32
    %11 = arith.extui %10 : i1 to i32
    %c0_i32_9 = arith.constant 0 : i32
    %12 = arith.cmpi ne, %11, %c0_i32_9 : i32
    scf.if %12 {
      %c0_10 = arith.constant 0 : index
      %c0_11 = arith.constant 0 : index
      %13 = vector.load %arg8[%c0_10, %c0_11] : memref<16x128xf32, #tpu.memory_space<vmem>>, vector<16x128xf32>
      %c0_12 = arith.constant 0 : index
      %c0_13 = arith.constant 0 : index
      %14 = vector.load %arg4[%c0_12, %c0_13] : memref<1x128xf32, #tpu.memory_space<vmem>>, vector<1x128xf32>
      %15 = vector.broadcast %14 : vector<1x128xf32> to vector<16x128xf32>
      %16 = arith.addf %13, %15 : vector<16x128xf32>
      %cst_14 = arith.constant 0.000000e+00 : f32
      %17 = vector.broadcast %cst_14 : f32 to vector<16x128xf32>
      %18 = arith.maximumf %16, %17 : vector<16x128xf32>
      %19 = arith.truncf %18 : vector<16x128xf32> to vector<16x128xbf16>
      %c0_15 = arith.constant 0 : index
      %c0_16 = arith.constant 0 : index
      %20 = vector.load %arg5[%c0_15, %c0_16] : memref<128x128xbf16, #tpu.memory_space<vmem>>, vector<128x128xbf16>
      %cst_17 = arith.constant dense<0.000000e+00> : vector<16x128xf32>
      %21 = tpu.matmul %19, %20, %cst_17 {dimension_numbers = #tpu.dot_dimension_numbers<[1], [0], [0], [1], [0, 0, 1, 1], [], []>} : vector<16x128xbf16>, vector<128x128xbf16>, vector<16x128xf32> -> vector<16x128xf32>
      %c0_18 = arith.constant 0 : index
      %c0_19 = arith.constant 0 : index
      %22 = vector.load %arg6[%c0_18, %c0_19] : memref<1x128xf32, #tpu.memory_space<vmem>>, vector<1x128xf32>
      %23 = vector.broadcast %22 : vector<1x128xf32> to vector<16x128xf32>
      %24 = arith.addf %21, %23 : vector<16x128xf32>
      %c0_20 = arith.constant 0 : index
      %c0_21 = arith.constant 0 : index
      %25 = vector.load %arg7[%c0_20, %c0_21] : memref<16x128xf32, #tpu.memory_space<vmem>>, vector<16x128xf32>
      tpu.vector_store %arg7[%c0_20, %c0_21], %24 {strides = array<i32>} : memref<16x128xf32, #tpu.memory_space<vmem>>, vector<16x128xf32>,
    } else {
    }
    return
  }
  func.func @transform_0(%arg0: i32, %arg1: i32) -> (i32, i32) {
    %c0_i32 = arith.constant 0 : i32
    return %arg0, %arg1 : i32, i32
  }
  func.func @transform_1(%arg0: i32, %arg1: i32) -> (i32, i32) {
    %c0_i32 = arith.constant 0 : i32
    %c0_i32_0 = arith.constant 0 : i32
    return %arg1, %c0_i32 : i32, i32
  }
  func.func @transform_2(%arg0: i32, %arg1: i32) -> (i32, i32) {
    %c0_i32 = arith.constant 0 : i32
    %c0_i32_0 = arith.constant 0 : i32
    %c0_i32_1 = arith.constant 0 : i32
    return %c0_i32, %c0_i32_0 : i32, i32
  }
  func.func @transform_3(%arg0: i32, %arg1: i32) -> (i32, i32) {
    %c0_i32 = arith.constant 0 : i32
    %c0_i32_0 = arith.constant 0 : i32
    %c0_i32_1 = arith.constant 0 : i32
    return %c0_i32, %c0_i32_0 : i32, i32
  }
  func.func @transform_4(%arg0: i32, %arg1: i32) -> (i32, i32) {
    %c0_i32 = arith.constant 0 : i32
    %c0_i32_0 = arith.constant 0 : i32
    %c0_i32_1 = arith.constant 0 : i32
    return %c0_i32, %c0_i32_0 : i32, i32
  }
  func.func @transform_5(%arg0: i32, %arg1: i32) -> (i32, i32) {
    %c0_i32 = arith.constant 0 : i32
    %c0_i32_0 = arith.constant 0 : i32
    return %arg0, %c0_i32 : i32, i32
  }
}

</mosaic_0001>

<llo_original>
// kernel: tpu_custom_call.1
$region0: #{tpu_custom_call.1}
  #allocation0 [shape = 'u32[]', space=smem, size = 0x4, offset = 0x4, fixed_abs, tag = 'smem constant byte address 0x4 - core index']
  #allocation1 [shape = 'u32[144,128]{1,0:T(1,128)}', space=vmem, size = 0x12000, scoped, tag = 'internal scratch']
  #allocation2 [shape = 'f32[16,128]{1,0:T(8,128)}', space=vmem, size = 0x2000, scoped, tag = 'scratch operand']
  %s0 = inlined_call_operand.hbm [shape: f32[32,256], index: 0, kind: input, shape index: {}]
  %s1 = inlined_call_operand.hbm [shape: bf16[256,128], index: 1, kind: input, shape index: {}]
  %s2 = inlined_call_operand.vmem [shape: f32[1,128], index: 2, kind: input, shape index: {}]
  %s3 = inlined_call_operand.hbm [shape: bf16[128,128], index: 3, kind: input, shape index: {}]
  %s4 = inlined_call_operand.vmem [shape: f32[1,128], index: 4, kind: input, shape index: {}]
  %s5 = inlined_call_operand.hbm [shape: f32[32,128], index: 5, kind: output, shape index: {}]
  %s6 = sld [smem:[#allocation0]]
  $region73: #{tpu_custom_call.1} parent=0
    _
  %s8 = ssub.s32 1, %s6
  %s9 = scalar_select 0, %s8, %s6
  $region1: #{tpu_custom_call.1} parent=0
    #allocation3 [shape = 'u8[32768]{0}', space=vmem, size = 0x8000, scoped, tag = 'input window, operand 0']
    #allocation4 [shape = 's32[2]{0}', space=sflag, size = 0x8, scoped, tag = 'scoped memory for tpu_custom_call.1']
    #allocation5 [shape = 's32[2]{0}', space=sflag, size = 0x8, scoped, tag = 'scoped memory for tpu_custom_call.1']
    #allocation6 [shape = 'u8[65536]{0}', space=vmem, size = 0x10000, scoped, tag = 'input window, operand 1, single buffered']
    #allocation7 [shape = 's32[1]{0}', space=sflag, size = 0x4, scoped, tag = 'scoped memory for tpu_custom_call.1']
    #allocation8 [shape = 'u8[32768]{0}', space=vmem, size = 0x8000, scoped, tag = 'input window, operand 3, single buffered']
    #allocation9 [shape = 'u8[16384]{0}', space=vmem, size = 0x4000, scoped, tag = 'output window, operand 0']
    %10 = vsyncpa [#allocation4], 0
    %s11 = scalar_lea.sflag [#allocation4], 1
    %12 = vsyncpa %s11, 0
    %13 = vsyncpa [#allocation7], 0
    %14 = vsyncpa [#allocation5], 0
    %s15 = scalar_lea.sflag [#allocation5], 1
    %16 = vsyncpa %s15, 0
    loop: start=0, step=1, limit=4
    $region2: #{tpu_custom_call.1} parent=1 // loop_pre_header
      _
    $region3: #{tpu_custom_call.1} parent=1 // loop_header
      %s18 = sphi 0, %s22
      %p19 = scmp.ge.s32.totalorder %s18, 4
      %s25 = sphi 0, %s37
      %s26 = sphi 0, %s33
      %s27 = sphi 0, %s25
      %s28 = sphi 0, %s26
      %s29 = sphi 0, %s27
      %s30 = sphi 0, %s28
      %s42 = sphi 0, %s44
      %s45 = sphi 0, %s42
      %s46 = sphi 0, %s45
      %s62 = sphi 0, %s46
      %s68 = sphi 0, %s70
      %s71 = sphi 0, %s68
      %s72 = sphi 0, %s71
      %s88 = sphi 0, %s72
      %s92 = sphi 0, %s92
      %s94 = sphi 0, %s92
      %s95 = sphi 0, %s94
      %s109 = sphi 0, %s95
      %s113 = sphi 0, %s113
      %s115 = sphi 0, %s113
      %s116 = sphi 0, %s115
      %s130 = sphi 0, %s116
      %s134 = sphi 0, %s134
      %s136 = sphi 0, %s134
      %s137 = sphi 0, %s136
      %s151 = sphi 0, %s137
      %s157 = sphi 0, %s159
      %s160 = sphi 0, %s157
      %s161 = sphi 0, %s160
      %s177 = sphi 0, %s161
    $region4: #{tpu_custom_call.1} parent=1 // loop_header_branch
      %21 = sbr.rel (%p19) target = $region8
    $region5: #{tpu_custom_call.1} parent=1 // loop_body
      %s23 = ssub.s32 %s18, 1
      %s24 = ssub.s32 %s18, 2
      %s31 = sadd.s32 1, %s26
      %p32 = scmp.ge.s32.totalorder %s31, 1
      %s33 = scalar_select %p32, 0, %s31
      %s34 = sadd.s32 1, %s25
      %s35 = scalar_select %p32, %s34, %s25
      %p36 = scmp.ge.s32.totalorder %s35, 2
      %s37 = scalar_select %p36, 0, %s35
      %s38 = ssub.s32 %s25, %s37
      %s39 = ssub.s32 %s26, %s33
      %s40 = sor.u32 %s38, %s39
      %p41 = scmp.eq.s32.totalorder %s40, 0
      %s43 = sadd.s32 %s42, 1
      %s44 = scalar_select %p41, %s42, %s43
      %p47 = pneg %p41
      %p48 = scmp.eq.s32.totalorder %s18, 1
      %p49 = por %p47, %p48
      %p50 = scmp.ne.s32.totalorder %s42, %s45
      %p51 = scmp.eq.s32.totalorder %s18, 0
      %p52 = por %p50, %p51
      %p53 = scmp.ne.s32.totalorder %s42, %s45
      %p54 = scmp.eq.s32.totalorder %s23, 1
      %p55 = por %p53, %p54
      %p56 = scmp.ne.s32.totalorder %s45, %s46
      %p57 = scmp.eq.s32.totalorder %s23, 0
      %p58 = por %p56, %p57
      %p59 = scmp.ne.s32.totalorder %s45, %s46
      %p60 = scmp.eq.s32.totalorder %s24, 1
      %p61 = por %p59, %p60
      %p63 = scmp.ne.s32.totalorder %s46, %s62
      %p64 = scmp.eq.s32.totalorder %s24, 0
      %p65 = por %p63, %p64
      %s66 = ssub.s32 %s26, %s33
      %p67 = scmp.eq.s32.totalorder %s66, 0
      %s69 = sadd.s32 %s68, 1
      %s70 = scalar_select %p67, %s68, %s69
      %p73 = pneg %p67
      %p74 = scmp.eq.s32.totalorder %s18, 1
      %p75 = por %p73, %p74
      %p76 = scmp.ne.s32.totalorder %s68, %s71
      %p77 = scmp.eq.s32.totalorder %s18, 0
      %p78 = por %p76, %p77
      %p79 = scmp.ne.s32.totalorder %s68, %s71
      %p80 = scmp.eq.s32.totalorder %s23, 1
      %p81 = por %p79, %p80
      %p82 = scmp.ne.s32.totalorder %s71, %s72
      %p83 = scmp.eq.s32.totalorder %s23, 0
      %p84 = por %p82, %p83
      %p85 = scmp.ne.s32.totalorder %s71, %s72
      %p86 = scmp.eq.s32.totalorder %s24, 1
      %p87 = por %p85, %p86
      %p89 = scmp.ne.s32.totalorder %s72, %s88
      %p90 = scmp.eq.s32.totalorder %s24, 0
      %p91 = por %p89, %p90
      %s93 = sadd.s32 %s92, 1
      %p96 = scmp.eq.s32.totalorder %s18, 1
      %p97 = scmp.ne.s32.totalorder %s92, %s94
      %p98 = scmp.eq.s32.totalorder %s18, 0
      %p99 = por %p97, %p98
      %p100 = scmp.ne.s32.totalorder %s92, %s94
      %p101 = scmp.eq.s32.totalorder %s23, 1
      %p102 = por %p100, %p101
      %p103 = scmp.ne.s32.totalorder %s94, %s95
      %p104 = scmp.eq.s32.totalorder %s23, 0
      %p105 = por %p103, %p104
      %p106 = scmp.ne.s32.totalorder %s94, %s95
      %p107 = scmp.eq.s32.totalorder %s24, 1
      %p108 = por %p106, %p107
      %p110 = scmp.ne.s32.totalorder %s95, %s109
      %p111 = scmp.eq.s32.totalorder %s24, 0
      %p112 = por %p110, %p111
      %s114 = sadd.s32 %s113, 1
      %p117 = scmp.eq.s32.totalorder %s18, 1
      %p118 = scmp.ne.s32.totalorder %s113, %s115
      %p119 = scmp.eq.s32.totalorder %s18, 0
      %p120 = por %p118, %p119
      %p121 = scmp.ne.s32.totalorder %s113, %s115
      %p122 = scmp.eq.s32.totalorder %s23, 1
      %p123 = por %p121, %p122
      %p124 = scmp.ne.s32.totalorder %s115, %s116
      %p125 = scmp.eq.s32.totalorder %s23, 0
      %p126 = por %p124, %p125
      %p127 = scmp.ne.s32.totalorder %s115, %s116
      %p128 = scmp.eq.s32.totalorder %s24, 1
      %p129 = por %p127, %p128
      %p131 = scmp.ne.s32.totalorder %s116, %s130
      %p132 = scmp.eq.s32.totalorder %s24, 0
      %p133 = por %p131, %p132
      %s135 = sadd.s32 %s134, 1
      %p138 = scmp.eq.s32.totalorder %s18, 1
      %p139 = scmp.ne.s32.totalorder %s134, %s136
      %p140 = scmp.eq.s32.totalorder %s18, 0
      %p141 = por %p139, %p140
      %p142 = scmp.ne.s32.totalorder %s134, %s136
      %p143 = scmp.eq.s32.totalorder %s23, 1
      %p144 = por %p142, %p143
      %p145 = scmp.ne.s32.totalorder %s136, %s137
      %p146 = scmp.eq.s32.totalorder %s23, 0
      %p147 = por %p145, %p146
      %p148 = scmp.ne.s32.totalorder %s136, %s137
      %p149 = scmp.eq.s32.totalorder %s24, 1
      %p150 = por %p148, %p149
      %p152 = scmp.ne.s32.totalorder %s137, %s151
      %p153 = scmp.eq.s32.totalorder %s24, 0
      %p154 = por %p152, %p153
      %s155 = ssub.s32 %s25, %s37
      %p156 = scmp.eq.s32.totalorder %s155, 0
      %s158 = sadd.s32 %s157, 1
      %s159 = scalar_select %p156, %s157, %s158
      %p162 = pneg %p156
      %p163 = scmp.eq.s32.totalorder %s18, 1
      %p164 = por %p162, %p163
      %p165 = scmp.ne.s32.totalorder %s157, %s160
      %p166 = scmp.eq.s32.totalorder %s18, 0
      %p167 = por %p165, %p166
      %p168 = scmp.ne.s32.totalorder %s157, %s160
      %p169 = scmp.eq.s32.totalorder %s23, 1
      %p170 = por %p168, %p169
      %p171 = scmp.ne.s32.totalorder %s160, %s161
      %p172 = scmp.eq.s32.totalorder %s23, 0
      %p173 = por %p171, %p172
      %p174 = scmp.ne.s32.totalorder %s160, %s161
      %p175 = scmp.eq.s32.totalorder %s24, 1
      %p176 = por %p174, %p175
      %p178 = scmp.ne.s32.totalorder %s161, %s177
      %p179 = scmp.eq.s32.totalorder %s24, 0
      %p180 = por %p178, %p179
      %p181 = scmp.le.s32.totalorder 1, %s18
      %p182 = scmp.lt.s32.totalorder %s18, 3
      %p183 = pnand %p181, %p182
      %p184 = pneg %p183
      // Predicated region
      $region9: #{tpu_custom_call.1} parent=5 // pred_check
        _
      $region10: #{tpu_custom_call.1} parent=5 // pred_check_branch
        %186 = sbr.rel (%p183) target = $region12
      $region11: #{tpu_custom_call.1} parent=5 // pred_region
        %s187 = ssub.s32 %s18, 1
        // Predicated region
        $region13: #{tpu_custom_call.1} parent=11 // pred_check
          %p188 = pneg %p84
        $region14: #{tpu_custom_call.1} parent=11 // pred_check_branch
          %190 = sbr.rel (%p188) target = $region16
        $region15: #{tpu_custom_call.1} parent=11 // pred_region
          %s191 = smul.u32 32, %s28
          %s193 = ssub.s32 2048, 2048
          %194 = vsyncadd [#allocation7], %s193
          %s195 = smul.addr %s191, 64
          %s196 = scalar_lea.hbm %s1, %s195
          %s197 = sshll.u32 [#allocation6], 4
          %s198 = int_to_ptr.vmem [resolvable:$true] %s197
          %203 = dma.hbm_to_vmem [thread:$0]  %s196, 2048, %s198, [#allocation7], 64, 64, 4
        $region16: #{tpu_custom_call.1} parent=11 // pred_fallthru
          _
        // Predicated region
        $region17: #{tpu_custom_call.1} parent=11 // pred_check
          %p204 = pneg %p105
        $region18: #{tpu_custom_call.1} parent=11 // pred_check_branch
          %206 = sbr.rel (%p204) target = $region20
        $region19: #{tpu_custom_call.1} parent=11 // pred_region
          _
        $region20: #{tpu_custom_call.1} parent=11 // pred_fallthru
          _
        // Predicated region
        $region21: #{tpu_custom_call.1} parent=11 // pred_check
          %p207 = pneg %p126
        $region22: #{tpu_custom_call.1} parent=11 // pred_check_branch
          %209 = sbr.rel (%p207) target = $region24
        $region23: #{tpu_custom_call.1} parent=11 // pred_region
          %s211 = ssub.s32 1024, 1024
          %212 = vsyncadd [#allocation7], %s211
          %s213 = sshll.u32 [#allocation8], 4
          %s214 = int_to_ptr.vmem [resolvable:$true] %s213
          %219 = dma.hbm_to_vmem [thread:$0]  %s3, 1024, %s214, [#allocation7], 64, 64, 4
        $region24: #{tpu_custom_call.1} parent=11 // pred_fallthru
          _
        // Predicated region
        $region25: #{tpu_custom_call.1} parent=11 // pred_check
          %p220 = pneg %p147
        $region26: #{tpu_custom_call.1} parent=11 // pred_check_branch
          %222 = sbr.rel (%p220) target = $region28
        $region27: #{tpu_custom_call.1} parent=11 // pred_region
          _
        $region28: #{tpu_custom_call.1} parent=11 // pred_fallthru
          _
      $region12: #{tpu_custom_call.1} parent=5 // pred_fallthru
        _
      %p223 = scmp.lt.s32.totalorder %s18, 2
      // Predicated region
      $region29: #{tpu_custom_call.1} parent=5 // pred_check
        %p224 = pneg %p223
      $region30: #{tpu_custom_call.1} parent=5 // pred_check_branch
        %226 = sbr.rel (%p224) target = $region32
      $region31: #{tpu_custom_call.1} parent=5 // pred_region
        // Predicated region
        $region33: #{tpu_custom_call.1} parent=31 // pred_check
          %p227 = pneg %p52
        $region34: #{tpu_custom_call.1} parent=31 // pred_check_branch
          %229 = sbr.rel (%p227) target = $region36
        $region35: #{tpu_custom_call.1} parent=31 // pred_region
          %s230 = sand.u32 %s42, 1
          %s231 = scalar_lea.sflag [#allocation4], %s230
          %s232 = sand.u32 %s42, 1
          %s233 = smul.addr %s232, 32
          %s234 = scalar_lea.vmem [#allocation3], %s233
          %s235 = smul.u32 2, %s25
          %s236 = smul.u32 2, %s26
          %s238 = ssub.s32 512, 512
          %239 = vsyncadd %s231, %s238
          %s240 = smul.addr %s235, 2
          %s241 = sadd.s32 %s236, %s240
          %s242 = smul.addr %s241, 128
          %s243 = scalar_lea.hbm %s0, %s242
          %s244 = sshll.u32 %s234, 4
          %s245 = int_to_ptr.vmem [resolvable:$true] %s244
          %250 = dma.hbm_to_vmem [thread:$0]  %s243, 512, %s245, %s231, 256, 256, 16
        $region36: #{tpu_custom_call.1} parent=31 // pred_fallthru
          _
      $region32: #{tpu_custom_call.1} parent=5 // pred_fallthru
        _
      %p251 = scmp.le.s32.totalorder 1, %s18
      %p252 = scmp.lt.s32.totalorder %s18, 3
      %p253 = pnand %p251, %p252
      %p254 = pneg %p253
      // Predicated region
      $region37: #{tpu_custom_call.1} parent=5 // pred_check
        _
      $region38: #{tpu_custom_call.1} parent=5 // pred_check_branch
        %256 = sbr.rel (%p253) target = $region40
      $region39: #{tpu_custom_call.1} parent=5 // pred_region
        %s257 = ssub.s32 %s18, 1
        %s258 = sand.u32 %s45, 1
        %s259 = scalar_lea.sflag [#allocation4], %s258
        %s260 = sand.u32 %s45, 1
        %s261 = smul.addr %s260, 32
        %s262 = scalar_lea.vmem [#allocation3], %s261
        // Predicated region
        $region41: #{tpu_custom_call.1} parent=39 // pred_check
          %p263 = pneg %p58
        $region42: #{tpu_custom_call.1} parent=39 // pred_check_branch
          %265 = sbr.rel (%p263) target = $region44
        $region43: #{tpu_custom_call.1} parent=39 // pred_region
          %266 = dma.done %s259, 512
        $region44: #{tpu_custom_call.1} parent=39 // pred_fallthru
          _
        // Predicated region
        $region45: #{tpu_custom_call.1} parent=39 // pred_check
          %p267 = pneg %p84
        $region46: #{tpu_custom_call.1} parent=39 // pred_check_branch
          %269 = sbr.rel (%p267) target = $region48
        $region47: #{tpu_custom_call.1} parent=39 // pred_region
          %270 = dma.done [#allocation7], 2048
        $region48: #{tpu_custom_call.1} parent=39 // pred_fallthru
          _
        // Predicated region
        $region49: #{tpu_custom_call.1} parent=39 // pred_check
          %p271 = pneg %p126
        $region50: #{tpu_custom_call.1} parent=39 // pred_check_branch
          %273 = sbr.rel (%p271) target = $region52
        $region51: #{tpu_custom_call.1} parent=39 // pred_region
          %274 = dma.done [#allocation7], 1024
        $region52: #{tpu_custom_call.1} parent=39 // pred_fallthru
          _
        %s275 = sand.u32 %s45, 1
        %s276 = scalar_lea.sflag [#allocation4], %s275
        %s277 = sand.u32 %s45, 1
        %s278 = smul.addr %s277, 32
        %s279 = scalar_lea.vmem [#allocation3], %s278
        %p280 = pneg %p58
        %p281 = pneg %p55
        %p282 = pneg %p84
        %p283 = pneg %p81
        %p284 = pneg %p105
        %p285 = pneg %p102
        %p286 = pneg %p126
        %p287 = pneg %p123
        %p288 = pneg %p147
        %p289 = pneg %p144
        %p290 = pneg %p173
        %p291 = pneg %p170
        %s292 = sand.u32 %s160, 1
        %s293 = scalar_lea.sflag [#allocation5], %s292
        %s294 = sand.u32 %s160, 1
        %s295 = smul.addr %s294, 16
        %s296 = scalar_lea.vmem [#allocation9], %s295
        %s297 = smul.u32 2, %s27
        %s298 = smul.u32 2, %s28
        %s299 = smul.u32 32, %s28
        %s300 = smul.u32 2, %s27
        %p302 = scmp.eq.s32.totalorder %s28, 0
        // Predicated region
        $region53: #{tpu_custom_call.1} parent=39 // pred_check
          %p303 = pneg %p302
        $region54: #{tpu_custom_call.1} parent=39 // pred_check_branch
          %305 = sbr.rel (%p303) target = $region56
        $region55: #{tpu_custom_call.1} parent=39 // pred_region
          %306 = vst [vmem:[#allocation2] sm:$0xff] 0.0
          %307 = vst [vmem:[#allocation2 + $0x8] sm:$0xff] 0.0
        $region56: #{tpu_custom_call.1} parent=39 // pred_fallthru
          _
        %v308 = vld [vmem:[#allocation2] sm:$0xff]
        %v309 = vld [vmem:[#allocation2 + $0x8] sm:$0xff]
        %v310 = vld [vmem:[%s262] sm:$0xff]
        %v311 = vld [vmem:[%s262 + $0x8] sm:$0xff]
        %v312 = vld [vmem:[%s262 + $0x10] sm:$0xff]
        %v313 = vld [vmem:[%s262 + $0x18] sm:$0xff]
        %v314 = vpack.c.bf16 %v312, %v310
        %v315 = vpack.c.bf16 %v313, %v311
        %v316 = vld [vmem:[#allocation6] sm:$0xf]
        %v317 = vld [vmem:[#allocation6 + $0x4] sm:$0xf]
        %v318 = vld [vmem:[#allocation6 + $0x8] sm:$0xf]
        %v319 = vld [vmem:[#allocation6 + $0xc] sm:$0xf]
        %v320 = vld [vmem:[#allocation6 + $0x10] sm:$0xf]
        %v321 = vld [vmem:[#allocation6 + $0x14] sm:$0xf]
        %v322 = vld [vmem:[#allocation6 + $0x18] sm:$0xf]
        %v323 = vld [vmem:[#allocation6 + $0x1c] sm:$0xf]
        %v324 = vld [vmem:[#allocation6 + $0x20] sm:$0xf]
        %v325 = vld [vmem:[#allocation6 + $0x24] sm:$0xf]
        %v326 = vld [vmem:[#allocation6 + $0x28] sm:$0xf]
        %v327 = vld [vmem:[#allocation6 + $0x2c] sm:$0xf]
        %v328 = vld [vmem:[#allocation6 + $0x30] sm:$0xf]
        %v329 = vld [vmem:[#allocation6 + $0x34] sm:$0xf]
        %v330 = vld [vmem:[#allocation6 + $0x38] sm:$0xf]
        %v331 = vld [vmem:[#allocation6 + $0x3c] sm:$0xf]
        %v332 = vld [vmem:[#allocation6 + $0x40] sm:$0xf]
        %v333 = vld [vmem:[#allocation6 + $0x44] sm:$0xf]
        %v334 = vld [vmem:[#allocation6 + $0x48] sm:$0xf]
        %v335 = vld [vmem:[#allocation6 + $0x4c] sm:$0xf]
        %v336 = vld [vmem:[#allocation6 + $0x50] sm:$0xf]
        %v337 = vld [vmem:[#allocation6 + $0x54] sm:$0xf]
        %v338 = vld [vmem:[#allocation6 + $0x58] sm:$0xf]
        %v339 = vld [vmem:[#allocation6 + $0x5c] sm:$0xf]
        %v340 = vld [vmem:[#allocation6 + $0x60] sm:$0xf]
        %v341 = vld [vmem:[#allocation6 + $0x64] sm:$0xf]
        %v342 = vld [vmem:[#allocation6 + $0x68] sm:$0xf]
        %v343 = vld [vmem:[#allocation6 + $0x6c] sm:$0xf]
        %v344 = vld [vmem:[#allocation6 + $0x70] sm:$0xf]
        %v345 = vld [vmem:[#allocation6 + $0x74] sm:$0xf]
        %v346 = vld [vmem:[#allocation6 + $0x78] sm:$0xf]
        %v347 = vld [vmem:[#allocation6 + $0x7c] sm:$0xf]
        %v380 = vunpack.c.l.b16 %v316
        %v381 = vunpack.c.l.b16 %v317
        %v382 = vunpack.c.l.b16 %v318
        %v383 = vunpack.c.l.b16 %v319
        %v384 = vunpack.c.l.b16 %v320
        %v385 = vunpack.c.l.b16 %v321
        %v386 = vunpack.c.l.b16 %v322
        %v387 = vunpack.c.l.b16 %v323
        %v388 = vunpack.c.l.b16 %v324
        %v389 = vunpack.c.l.b16 %v325
        %v390 = vunpack.c.l.b16 %v326
        %v391 = vunpack.c.l.b16 %v327
        %v392 = vunpack.c.l.b16 %v328
        %v393 = vunpack.c.l.b16 %v329
        %v394 = vunpack.c.l.b16 %v330
        %v395 = vunpack.c.l.b16 %v331
        %v396 = vunpack.c.l.b16 %v332
        %v397 = vunpack.c.l.b16 %v333
        %v398 = vunpack.c.l.b16 %v334
        %v399 = vunpack.c.l.b16 %v335
        %v400 = vunpack.c.l.b16 %v336
        %v401 = vunpack.c.l.b16 %v337
        %v402 = vunpack.c.l.b16 %v338
        %v403 = vunpack.c.l.b16 %v339
        %v404 = vunpack.c.l.b16 %v340
        %v405 = vunpack.c.l.b16 %v341
        %v406 = vunpack.c.l.b16 %v342
        %v407 = vunpack.c.l.b16 %v343
        %v408 = vunpack.c.l.b16 %v344
        %v409 = vunpack.c.l.b16 %v345
        %v410 = vunpack.c.l.b16 %v346
        %v411 = vunpack.c.l.b16 %v347
        %v412 = vpack.c.b16 %v381, %v380
        %v413 = vpack.c.b16 %v383, %v382
        %v414 = vpack.c.b16 %v385, %v384
        %v415 = vpack.c.b16 %v387, %v386
        %v416 = vpack.c.b16 %v389, %v388
        %v417 = vpack.c.b16 %v391, %v390
        %v418 = vpack.c.b16 %v393, %v392
        %v419 = vpack.c.b16 %v395, %v394
        %v420 = vpack.c.b16 %v397, %v396
        %v421 = vpack.c.b16 %v399, %v398
        %v422 = vpack.c.b16 %v401, %v400
        %v423 = vpack.c.b16 %v403, %v402
        %v424 = vpack.c.b16 %v405, %v404
        %v425 = vpack.c.b16 %v407, %v406
        %v426 = vpack.c.b16 %v409, %v408
        %v427 = vpack.c.b16 %v411, %v410
        %444 = vmatprep.subr.bf16.mxu0 0
        %445 = vmatpush1.bf16.msra.mxu0 %v412
        %446 = vmatprep.subr.bf16.mxu0 0
        %447 = vmatpush1.bf16.msra.mxu0 %v413
        %448 = vmatprep.subr.bf16.mxu0 0
        %449 = vmatpush1.bf16.msra.mxu0 %v414
        %450 = vmatprep.subr.bf16.mxu0 0
        %451 = vmatpush1.bf16.msra.mxu0 %v415
        %452 = vmatprep.subr.bf16.mxu0 0
        %453 = vmatpush1.bf16.msra.mxu0 %v416
        %454 = vmatprep.subr.bf16.mxu0 0
        %455 = vmatpush1.bf16.msra.mxu0 %v417
        %456 = vmatprep.subr.bf16.mxu0 0
        %457 = vmatpush1.bf16.msra.mxu0 %v418
        %458 = vmatprep.subr.bf16.mxu0 0
        %459 = vmatpush1.bf16.msra.mxu0 %v419
        %460 = vmatprep.subr.bf16.mxu0 0
        %461 = vmatpush1.bf16.msra.mxu0 %v420
        %462 = vmatprep.subr.bf16.mxu0 0
        %463 = vmatpush1.bf16.msra.mxu0 %v421
        %464 = vmatprep.subr.bf16.mxu0 0
        %465 = vmatpush1.bf16.msra.mxu0 %v422
        %466 = vmatprep.subr.bf16.mxu0 0
        %467 = vmatpush1.bf16.msra.mxu0 %v423
        %468 = vmatprep.subr.bf16.mxu0 0
        %469 = vmatpush1.bf16.msra.mxu0 %v424
        %470 = vmatprep.subr.bf16.mxu0 0
        %471 = vmatpush1.bf16.msra.mxu0 %v425
        %472 = vmatprep.subr.bf16.mxu0 0
        %473 = vmatpush1.bf16.msra.mxu0 %v426
        %474 = vmatprep.subr.bf16.mxu0 0
        %475 = vmatpush1.bf16.msra.mxu0 %v427
        %476 = vmatprep.mubr.bf16.mxu0 %v315
        %477 = vmatmul.mubr.bf16.gmra.mrb[0].mxu0 %v314
        %v478 = vpop.f32.mrb[0].mxu0
        %v479 = vadd.f32 0.0, %v478
        %v480 = vpop.f32.mrb[0].mxu0
        %v481 = vpop.f32.mrb[0].mxu0
        %v482 = vadd.f32 0.0, %v481
        %v483 = vpop.f32.mrb[0].mxu0
        %484 = vdwg.mxu0
        %v485 = vadd.f32 %v308, %v479
        %v486 = vadd.f32 %v309, %v482
        %487 = vst [vmem:[#allocation2] sm:$0xff] %v485
        %488 = vst [vmem:[#allocation2 + $0x8] sm:$0xff] %v486
        // Predicated region
        $region57: #{tpu_custom_call.1} parent=39 // pred_check
          %p489 = pneg %p302
        $region58: #{tpu_custom_call.1} parent=39 // pred_check_branch
          %491 = sbr.rel (%p489) target = $region60
        $region59: #{tpu_custom_call.1} parent=39 // pred_region
          %v492 = vld [vmem:[#allocation2] sm:$0xff]
          %v493 = vld [vmem:[#allocation2 + $0x8] sm:$0xff]
          %v494 = vld [vmem:[%s2] sm:$0x1]
          %v496 = vlaneseq
          %v497 = vshrl.u32 %v496, 7
          %v498 = vsub.s32 0, %v497
          %v499 = vrot.slane %v494, %v498
          %v501 = vadd.f32 %v492, %v499
          %v502 = vadd.f32 %v493, %v499
          %v503 = vmax.f32 %v501, 0.0
          %v504 = vmax.f32 %v502, 0.0
          %v505 = vpack.c.bf16 %v504, %v503
          %v506 = vld [vmem:[#allocation8] sm:$0xf]
          %v507 = vld [vmem:[#allocation8 + $0x4] sm:$0xf]
          %v508 = vld [vmem:[#allocation8 + $0x8] sm:$0xf]
          %v509 = vld [vmem:[#allocation8 + $0xc] sm:$0xf]
          %v510 = vld [vmem:[#allocation8 + $0x10] sm:$0xf]
          %v511 = vld [vmem:[#allocation8 + $0x14] sm:$0xf]
          %v512 = vld [vmem:[#allocation8 + $0x18] sm:$0xf]
          %v513 = vld [vmem:[#allocation8 + $0x1c] sm:$0xf]
          %v514 = vld [vmem:[#allocation8 + $0x20] sm:$0xf]
          %v515 = vld [vmem:[#allocation8 + $0x24] sm:$0xf]
          %v516 = vld [vmem:[#allocation8 + $0x28] sm:$0xf]
          %v517 = vld [vmem:[#allocation8 + $0x2c] sm:$0xf]
          %v518 = vld [vmem:[#allocation8 + $0x30] sm:$0xf]
          %v519 = vld [vmem:[#allocation8 + $0x34] sm:$0xf]
          %v520 = vld [vmem:[#allocation8 + $0x38] sm:$0xf]
          %v521 = vld [vmem:[#allocation8 + $0x3c] sm:$0xf]
          %v522 = vld [vmem:[%s4] sm:$0x1]
          %v524 = vlaneseq
          %v525 = vshrl.u32 %v524, 7
          %v526 = vsub.s32 0, %v525
          %v527 = vrot.slane %v522, %v526
          %v545 = vunpack.c.l.b16 %v506
          %v546 = vunpack.c.l.b16 %v507
          %v547 = vunpack.c.l.b16 %v508
          %v548 = vunpack.c.l.b16 %v509
          %v549 = vunpack.c.l.b16 %v510
          %v550 = vunpack.c.l.b16 %v511
          %v551 = vunpack.c.l.b16 %v512
          %v552 = vunpack.c.l.b16 %v513
          %v553 = vunpack.c.l.b16 %v514
          %v554 = vunpack.c.l.b16 %v515
          %v555 = vunpack.c.l.b16 %v516
          %v556 = vunpack.c.l.b16 %v517
          %v557 = vunpack.c.l.b16 %v518
          %v558 = vunpack.c.l.b16 %v519
          %v559 = vunpack.c.l.b16 %v520
          %v560 = vunpack.c.l.b16 %v521
          %v561 = vpack.c.b16 %v546, %v545
          %v562 = vpack.c.b16 %v548, %v547
          %v563 = vpack.c.b16 %v550, %v549
          %v564 = vpack.c.b16 %v552, %v551
          %v565 = vpack.c.b16 %v554, %v553
          %v566 = vpack.c.b16 %v556, %v555
          %v567 = vpack.c.b16 %v558, %v557
          %v568 = vpack.c.b16 %v560, %v559
          %577 = vmatprep.subr.bf16.mxu0 0
          %578 = vmatpush1.bf16.msra.mxu0 %v561
          %579 = vmatprep.subr.bf16.mxu0 0
          %580 = vmatpush1.bf16.msra.mxu0 %v562
          %581 = vmatprep.subr.bf16.mxu0 0
          %582 = vmatpush1.bf16.msra.mxu0 %v563
          %583 = vmatprep.subr.bf16.mxu0 0
          %584 = vmatpush1.bf16.msra.mxu0 %v564
          %585 = vmatprep.subr.bf16.mxu0 0
          %586 = vmatpush1.bf16.msra.mxu0 %v565
          %587 = vmatprep.subr.bf16.mxu0 0
          %588 = vmatpush1.bf16.msra.mxu0 %v566
          %589 = vmatprep.subr.bf16.mxu0 0
          %590 = vmatpush1.bf16.msra.mxu0 %v567
          %591 = vmatprep.subr.bf16.mxu0 0
          %592 = vmatpush1.bf16.msra.mxu0 %v568
          %593 = vmatprep.subr.bf16.mxu0 0
          %594 = vmatpush1.bf16.msra.mxu0 0
          %595 = vmatprep.subr.bf16.mxu0 0
          %596 = vmatpush1.bf16.msra.mxu0 0
          %597 = vmatprep.subr.bf16.mxu0 0
          %598 = vmatpush1.bf16.msra.mxu0 0
          %599 = vmatprep.subr.bf16.mxu0 0
          %600 = vmatpush1.bf16.msra.mxu0 0
          %601 = vmatprep.subr.bf16.mxu0 0
          %602 = vmatpush1.bf16.msra.mxu0 0
          %603 = vmatprep.subr.bf16.mxu0 0
          %604 = vmatpush1.bf16.msra.mxu0 0
          %605 = vmatprep.subr.bf16.mxu0 0
          %606 = vmatpush1.bf16.msra.mxu0 0
          %607 = vmatprep.subr.bf16.mxu0 0
          %608 = vmatpush1.bf16.msra.mxu0 0
          %609 = vmatprep.mubr.bf16.mxu0 0
          %610 = vmatmul.mubr.bf16.gmra.mrb[0].mxu0 %v505
          %v611 = vpop.f32.mrb[0].mxu0
          %v612 = vadd.f32 %v527, %v611
          %v613 = vpop.f32.mrb[0].mxu0
          %v614 = vpop.f32.mrb[0].mxu0
          %v615 = vadd.f32 %v527, %v614
          %v616 = vpop.f32.mrb[0].mxu0
          %617 = vdwg.mxu0
          %618 = vst [vmem:[%s296] sm:$0xff] %v612
          %619 = vst [vmem:[%s296 + $0x8] sm:$0xff] %v615
        $region60: #{tpu_custom_call.1} parent=39 // pred_fallthru
          _
        %s620 = sand.u32 %s160, 1
        %s621 = scalar_lea.sflag [#allocation5], %s620
        %s622 = sand.u32 %s160, 1
        %s623 = smul.addr %s622, 16
        %s624 = scalar_lea.vmem [#allocation9], %s623
        // Predicated region
        $region61: #{tpu_custom_call.1} parent=39 // pred_check
          %p625 = pneg %p170
        $region62: #{tpu_custom_call.1} parent=39 // pred_check_branch
          %627 = sbr.rel (%p625) target = $region64
        $region63: #{tpu_custom_call.1} parent=39 // pred_region
          %s628 = smul.u32 2, %s27
          %s630 = ssub.s32 256, 256
          %631 = vsyncadd %s621, %s630
          %s632 = smul.addr %s628, 128
          %s633 = scalar_lea.hbm %s5, %s632
          %s634 = sshll.u32 %s624, 4
          %s635 = int_to_ptr.vmem [resolvable:$true] %s634
          %640 = dma.vmem_to_hbm [thread:$0]  %s635, 256, %s633, %s621, 128, 128, 8
        $region64: #{tpu_custom_call.1} parent=39 // pred_fallthru
          _
      $region40: #{tpu_custom_call.1} parent=5 // pred_fallthru
        _
      %p641 = scmp.le.s32.totalorder 2, %s18
      // Predicated region
      $region65: #{tpu_custom_call.1} parent=5 // pred_check
        %p642 = pneg %p641
      $region66: #{tpu_custom_call.1} parent=5 // pred_check_branch
        %644 = sbr.rel (%p642) target = $region68
      $region67: #{tpu_custom_call.1} parent=5 // pred_region
        %s645 = ssub.s32 %s18, 2
        // Predicated region
        $region69: #{tpu_custom_call.1} parent=67 // pred_check
          %p646 = pneg %p176
        $region70: #{tpu_custom_call.1} parent=67 // pred_check_branch
          %648 = sbr.rel (%p646) target = $region72
        $region71: #{tpu_custom_call.1} parent=67 // pred_region
          %s649 = sand.u32 %s161, 1
          %s650 = scalar_lea.sflag [#allocation5], %s649
          %s651 = sand.u32 %s161, 1
          %s652 = smul.addr %s651, 16
          %s653 = scalar_lea.vmem [#allocation9], %s652
          %654 = dma.done %s650, 256
        $region72: #{tpu_custom_call.1} parent=67 // pred_fallthru
          _
      $region68: #{tpu_custom_call.1} parent=5 // pred_fallthru
        _
    $region6: #{tpu_custom_call.1} parent=1 // loop_footer
      %s22 = sadd.s32 1, %s18
    $region7: #{tpu_custom_call.1} parent=1 // loop_footer_branch
      %17 = sbr.rel target = $region3
    $region8: #{tpu_custom_call.1} parent=1 // loop_exit
      _
    %655 = vsyncpa [#allocation4], 1
    %s656 = scalar_lea.sflag [#allocation4], 1
    %657 = vsyncpa %s656, 1
    %658 = vsyncpa [#allocation7], 1
    %659 = vsyncpa [#allocation5], 1
    %s660 = scalar_lea.sflag [#allocation5], 1
    %661 = vsyncpa %s660, 1

</llo_original>
